<compile_context>
chip_gen: v6e
topology: v6e:2x2x1
jax: 0.10.0
libtpu: 0.0.40
codegen_flags: <defaults>
</compile_context>

<pallas_src>
import functools

import jax
import jax.numpy as jnp
from jax.experimental import pallas as pl
from jax.experimental.pallas import tpu as pltpu


def _round_up(v, m):
    return ((v + m - 1) // m) * m


# ---------------------------------------------------------------------------
# Kernel 1: fused Q/K/V projection  qkv = x @ [Wq | Wk | Wv]  (bf16 MXU),
#           emitted as a lane-dense (128-wide) bf16 table.
# ---------------------------------------------------------------------------
def qkv_proj_kernel(x_ref, w_ref, qkv_ref):
    qkv_ref[...] = jnp.dot(
        x_ref[...].astype(jnp.bfloat16), w_ref[...],
        preferred_element_type=jnp.float32).astype(jnp.bfloat16)


# ---------------------------------------------------------------------------
# Kernel 2: per-edge-block  one-hot gather -> edge encoder -> attention ->
#           softmax over heads -> fused transposed scatter-add into the
#           resident [HF, N_pad] f32 output/accumulator.
# ---------------------------------------------------------------------------
def attn_agg_kernel(meta_ref, qkv_hbm, w1_ref, b1_ref, w2ct_ref, b2ct_ref,
                    hsel_ref, hbc_ref,
                    out_ref,                      # [HF, N_pad] f32, resident accumulator
                    qkv_buf, qkv_sem,             # scratch: single-buffered QKV table
                    *, n_heads, out_features):
    H, F = n_heads, out_features
    HF = H * F
    e_blk = meta_ref.shape[0]
    n_pad = qkv_buf.shape[0]
    blk = pl.program_id(0)

    @pl.when(blk == 0)
    def _init():
        out_ref[...] = jnp.zeros_like(out_ref)
        # one-time HBM -> VMEM copy of the QKV table (single-buffered,
        # persists in scratch across all edge blocks).
        cp = pltpu.make_async_copy(qkv_hbm, qkv_buf, qkv_sem)
        cp.start()
        cp.wait()

    # ---- merged per-edge metadata: [src, dst, ea0, ea1, 0...] -------------
    meta = meta_ref[...]                                  # [E_BLK, 8] f32
    src_col = meta[:, 0:1].astype(jnp.int32)              # [E_BLK, 1]
    dst_col = meta[:, 1:2].astype(jnp.int32)              # [E_BLK, 1]
    ea = meta[:, 2:4]                                     # [E_BLK, 2]

    # ---- vectorized gather: one-hot (VPU compare) + bf16 MXU matmuls -------
    niota = jax.lax.broadcasted_iota(jnp.int32, (e_blk, n_pad), 1)
    src_oh = (niota == src_col).astype(jnp.bfloat16)      # [E_BLK, N_pad]
    dst_oh = (niota == dst_col).astype(jnp.bfloat16)      # [E_BLK, N_pad]

    tab = qkv_buf[...]                                    # [N_pad, 128] bf16
    gsrc = jnp.dot(src_oh, tab, preferred_element_type=jnp.float32)
    gdst = jnp.dot(dst_oh, tab, preferred_element_type=jnp.float32)
    q = gsrc[:, 0:HF]                                     # [E_BLK, HF]
    k = gdst[:, HF:2 * HF]                                # [E_BLK, HF]
    v = gdst[:, 2 * HF:3 * HF]                            # [E_BLK, HF]

    # ---- fused edge encoder: relu(ea @ W1 + b1) @ (W2 Wc tiled over heads) -
    # K=2 first layer as two VPU broadcast-FMAs (no K=2 MXU pass).
    h1 = ea[:, 0:1] * w1_ref[0:1, :] + ea[:, 1:2] * w1_ref[1:2, :] + b1_ref[...]
    h1 = jnp.maximum(h1, 0.0)                             # [E_BLK, C]
    ec = jnp.dot(h1, w2ct_ref[...],
                 preferred_element_type=jnp.float32) + b2ct_ref[...]   # [E_BLK, HF]

    # ---- attention scores for all heads with one small MXU contraction -----
    qke = q * k * ec                                      # [E_BLK, HF]
    scores = jnp.dot(qke, hsel_ref[...],
                     preferred_element_type=jnp.float32) * (1.0 / (F ** 0.5))  # [E_BLK, H]

    # softmax over the HEAD dimension (matches F.softmax(attn_score, dim=-1))
    m = jnp.max(scores, axis=-1, keepdims=True)
    p = jnp.exp(scores - m)
    wts = p * pl.reciprocal(jnp.sum(p, axis=-1, keepdims=True), approx=True)   # [E_BLK, H]

    # broadcast per-head weights back to HF lanes with VPU FMAs
    wb = wts[:, 0:1] * hbc_ref[0:1, :]
    for hh in range(1, H):
        wb = wb + wts[:, hh:hh + 1] * hbc_ref[hh:hh + 1, :]                    # [E_BLK, HF]
    weighted = (wb * v).astype(jnp.bfloat16)              # [E_BLK, HF]

    # ---- fused scatter-add, lane-dense transposed layout: contract edges ---
    # acc[c, n] += sum_e weighted[e, c] * src_oh[e, n]
    out_ref[...] += jax.lax.dot_general(
        weighted, src_oh, (((0,), (0,)), ((), ())),
        preferred_element_type=jnp.float32)               # [HF, N_pad]


# ---------------------------------------------------------------------------
# Kernel 3: fc_out over node blocks (lane-dense output, megacore-parallel).
# ---------------------------------------------------------------------------
def fc_out_kernel(acc_ref, wout_ref, out_ref):
    # out[n, o] = sum_c acc[c, n] * wout[c, o]
    out_ref[...] = jax.lax.dot_general(
        acc_ref[...], wout_ref[...], (((0,), (0,)), ((), ())),
        preferred_element_type=jnp.float32)


# ---------------------------------------------------------------------------
# Wrapper module
# ---------------------------------------------------------------------------
class MultiHeadGATLayerPallas:
    def __init__(self, in_features, out_features, num_heads=2, C_dim=16, key=None):
        self.in_features = in_features
        self.out_features = out_features
        self.n_heads = num_heads
        self.C_dim = C_dim

        H, F, C = num_heads, out_features, C_dim
        HF = H * F
        keys = jax.random.split(key, 9)
        s = 0.1
        # weights stored as [in_dim, out_dim] (torch weight transposed)
        self.wq = s * jax.random.normal(keys[0], (in_features, HF), jnp.float32)
        self.wk = s * jax.random.normal(keys[1], (in_features, HF), jnp.float32)
        self.wv = s * jax.random.normal(keys[2], (in_features, HF), jnp.float32)
        self.w1 = s * jax.random.normal(keys[3], (2, C), jnp.float32)        # twoFCN.fc1
        self.b1 = s * jax.random.normal(keys[4], (1, C), jnp.float32)
        self.w2 = s * jax.random.normal(keys[5], (C, C), jnp.float32)        # twoFCN.fc2
        self.b2 = s * jax.random.normal(keys[6], (1, C), jnp.float32)
        self.wc = s * jax.random.normal(keys[7], (C, F), jnp.float32)        # fc_c
        self.wout = s * jax.random.normal(keys[8], (HF, F), jnp.float32)     # fc_out

        # ---- derived / fused kernel-side parameters ------------------------
        self.qkv_lanes = _round_up(3 * HF, 128)           # lane-dense bf16 QKV table width
        self.out_lanes = _round_up(F, 128)                # lane-dense fc_out output width

        wqkv = jnp.concatenate([self.wq, self.wk, self.wv], axis=1)          # [in, 3HF]
        self.wqkv_pad = (jnp.zeros((in_features, self.qkv_lanes), jnp.float32)
                         .at[:, :3 * HF].set(wqkv)).astype(jnp.bfloat16)

        # W2 @ Wc folded together and tiled over heads -> edge encoder emits
        # a head-expanded [E, HF] tensor directly inside kernel 2.
        w2c = self.w2 @ self.wc                                              # [C, F]
        b2c = self.b2 @ self.wc                                              # [1, F]
        self.w2ct = jnp.tile(w2c, (1, H))                                    # [C, HF]
        self.b2ct = jnp.tile(b2c, (1, H))                                    # [1, HF]

        # head-selector constants: hsel sums each head's F lanes, hbc
        # broadcasts per-head weights back to HF lanes.
        head_of_col = jnp.arange(HF, dtype=jnp.int32) // F
        self.hsel = (head_of_col[:, None]
                     == jnp.arange(H, dtype=jnp.int32)[None, :]).astype(jnp.float32)  # [HF, H]
        self.hbc = jnp.transpose(self.hsel)                                  # [H, HF]

        # fc_out weight zero-padded to a lane-dense 128-wide slab (f32).
        self.wout_pad = (jnp.zeros((HF, self.out_lanes), jnp.float32)
                         .at[:, :F].set(self.wout))

    def __call__(self, x, edge_index, edge_attr1, *, edge_block=256):
        N = x.shape[0]
        E = edge_index.shape[1]
        H, F, C = self.n_heads, self.out_features, self.C_dim
        HF = H * F

        # Node padding: one extra "dump" row (index N) that padded edges point
        # at (its Q/K/V rows are zero because x is zero-padded and there are
        # no projection biases -- keep this invariant if biases are ever added).
        n_pad = _round_up(N + 1, 128)
        n_blk1 = 256 if n_pad % 256 == 0 else 128         # QKV projection row block
        n_blk3 = 128                                      # fc_out row block

        # Edge-block tiling (256 fills the v6e/v7x MXU K dim; 128 on v5e).
        e_blk = _round_up(min(edge_block, max(E, 8)), 8)
        e_pad = _round_up(E, e_blk)

        x_p = jnp.pad(x.astype(jnp.float32), ((0, n_pad - N), (0, 0)))
        src = edge_index[0].astype(jnp.int32)
        dst = edge_index[1].astype(jnp.int32)
        src_p = jnp.pad(src, (0, e_pad - E), constant_values=N)   # padded edges -> dump row
        dst_p = jnp.pad(dst, (0, e_pad - E), constant_values=N)
        ea_p = jnp.pad(edge_attr1.astype(jnp.float32), ((0, e_pad - E), (0, 0)))

        # merged per-edge metadata: one DMA per edge block instead of several
        # lane-sparse ones.  Indices stored as f32 (exact for N < 2^24).
        meta = jnp.zeros((e_pad, 8), jnp.float32)
        meta = meta.at[:, 0].set(src_p.astype(jnp.float32))
        meta = meta.at[:, 1].set(dst_p.astype(jnp.float32))
        meta = meta.at[:, 2:4].set(ea_p)

        # ---------------- kernel 1: fused QKV projection (bf16 table) --------
        qkv = pl.pallas_call(
            qkv_proj_kernel,
            out_shape=jax.ShapeDtypeStruct((n_pad, self.qkv_lanes), jnp.bfloat16),
            grid=(n_pad // n_blk1,),
            in_specs=[pl.BlockSpec((n_blk1, self.in_features), lambda i: (i, 0)),
                      pl.BlockSpec((self.in_features, self.qkv_lanes), lambda i: (0, 0))],
            out_specs=pl.BlockSpec((n_blk1, self.qkv_lanes), lambda i: (i, 0)),
            compiler_params=pltpu.CompilerParams(
                dimension_semantics=("parallel",)),
        )(x_p, self.wqkv_pad)

        # ---------------- kernel 2: attention + aggregation ------------------
        kern = functools.partial(attn_agg_kernel, n_heads=H, out_features=F)
        acc = pl.pallas_call(
            kern,
            out_shape=jax.ShapeDtypeStruct((HF, n_pad), jnp.float32),
            grid=(e_pad // e_blk,),
            in_specs=[
                pl.BlockSpec((e_blk, 8), lambda i: (i, 0)),         # edge meta
                pl.BlockSpec(memory_space=pl.ANY),                  # QKV table (HBM, copied once)
                pl.BlockSpec((2, C), lambda i: (0, 0)),             # w1
                pl.BlockSpec((1, C), lambda i: (0, 0)),             # b1
                pl.BlockSpec((C, HF), lambda i: (0, 0)),            # w2ct
                pl.BlockSpec((1, HF), lambda i: (0, 0)),            # b2ct
                pl.BlockSpec((HF, H), lambda i: (0, 0)),            # hsel
                pl.BlockSpec((H, HF), lambda i: (0, 0)),            # hbc
            ],
            out_specs=pl.BlockSpec((HF, n_pad), lambda i: (0, 0)),  # resident accumulator
            scratch_shapes=[
                pltpu.VMEM((n_pad, self.qkv_lanes), jnp.bfloat16),  # single-buffered table
                pltpu.SemaphoreType.DMA,
            ],
            compiler_params=pltpu.CompilerParams(
                dimension_semantics=("arbitrary",)),
        )(meta, qkv, self.w1, self.b1, self.w2ct, self.b2ct, self.hsel, self.hbc)

        # ---------------- kernel 3: fc_out (node-tiled, lane-dense) ----------
        out_padded = pl.pallas_call(
            fc_out_kernel,
            out_shape=jax.ShapeDtypeStruct((n_pad, self.out_lanes), jnp.float32),
            grid=(n_pad // n_blk3,),
            in_specs=[pl.BlockSpec((HF, n_blk3), lambda i: (0, i)),
                      pl.BlockSpec((HF, self.out_lanes), lambda i: (0, 0))],
            out_specs=pl.BlockSpec((n_blk3, self.out_lanes), lambda i: (i, 0)),
            compiler_params=pltpu.CompilerParams(
                dimension_semantics=("parallel",)),
        )(acc, self.wout_pad)

        return out_padded[:N, :F]


# ---------------------------------------------------------------------------
# Pure-JAX f32 reference (mirrors the PyTorch forward exactly)
# ---------------------------------------------------------------------------
def reference(layer, x, edge_index, edge_attr1):
    H, F = layer.n_heads, layer.out_features
    N = x.shape[0]
    Q = (x @ layer.wq).reshape(-1, H, F)
    K = (x @ layer.wk).reshape(-1, H, F)
    V = (x @ layer.wv).reshape(-1, H, F)
    h = jax.nn.relu(edge_attr1 @ layer.w1 + layer.b1)
    h = h @ layer.w2 + layer.b2
    ec = h @ layer.wc                                            # [E, F]
    src = edge_index[0]
    dst = edge_index[1]
    q, k, v = Q[src], K[dst], V[dst]                             # [E, H, F]
    scores = jnp.sum(q * k * ec[:, None, :], axis=-1) / (F ** 0.5)   # [E, H]
    w = jax.nn.softmax(scores, axis=-1)[..., None]               # softmax over heads
    out = w * v                                                  # [E, H, F]
    agg = jnp.zeros((N, H, F), jnp.float32).at[src].add(out)
    return agg.reshape(-1, H * F) @ layer.wout


if __name__ == "__main__":
    key = jax.random.PRNGKey(0)
    kx, ke, ka, kp = jax.random.split(key, 4)

    N, E = 24, 200
    in_features, out_features, num_heads, C_dim = 16, 8, 2, 16

    layer = MultiHeadGATLayerPallas(in_features, out_features, num_heads, C_dim, key=kp)

    x = jax.random.normal(kx, (N, in_features), jnp.float32)
    edge_index = jax.random.randint(ke, (2, E), 0, N, dtype=jnp.int32)
    edge_attr1 = jax.random.normal(ka, (E, 2), jnp.float32)

    out = layer(x, edge_index, edge_attr1)
    out = jax.block_until_ready(out)

    ref = reference(layer, x, edge_index, edge_attr1)
    assert out.shape == (N, out_features)
    max_diff = float(jnp.max(jnp.abs(out - ref)))
    if max_diff > 5e-2:   # bf16 QKV table + bf16 MXU operands vs pure-f32 reference
        raise SystemExit(f"mismatch vs reference: max abs diff = {max_diff}")
    print("KERNEL_OK")
</pallas_src>

<mosaic_0001>
module attributes {stable_mosaic.version = 11 : i64} {
  func.func @qkv_proj_kernel(%arg0: i32, %arg1: memref<128x16xf32, #tpu.memory_space<vmem>>, %arg2: memref<16x128xbf16, #tpu.memory_space<vmem>>, %arg3: memref<128x128xbf16, #tpu.memory_space<vmem>>) attributes {dimension_semantics = [#tpu.dimension_semantics<parallel>], iteration_bounds = array<i64: 1>, scalar_prefetch = 0 : i64, scratch_operands = 0 : i64, tpu.core_type = #tpu.core_type<tc>, window_params = [{transform_indices = @transform_0, window_bounds = array<i64: 128, 16>}, {pipeline_mode = #tpu.pipeline_mode<synchronous>, transform_indices = @transform_1, window_bounds = array<i64: 16, 128>}, {transform_indices = @transform_2, window_bounds = array<i64: 128, 128>}]} {
    %c0 = arith.constant 0 : index
    %c0_0 = arith.constant 0 : index
    %0 = vector.load %arg1[%c0, %c0_0] : memref<128x16xf32, #tpu.memory_space<vmem>>, vector<128x16xf32>
    %1 = arith.truncf %0 : vector<128x16xf32> to vector<128x16xbf16>
    %c0_1 = arith.constant 0 : index
    %c0_2 = arith.constant 0 : index
    %2 = vector.load %arg2[%c0_1, %c0_2] : memref<16x128xbf16, #tpu.memory_space<vmem>>, vector<16x128xbf16>
    %cst = arith.constant dense<0.000000e+00> : vector<128x128xf32>
    %3 = tpu.matmul %1, %2, %cst {dimension_numbers = #tpu.dot_dimension_numbers<[1], [0], [0], [1], [0, 0, 1, 1], [], []>} : vector<128x16xbf16>, vector<16x128xbf16>, vector<128x128xf32> -> vector<128x128xf32>
    %4 = arith.truncf %3 : vector<128x128xf32> to vector<128x128xbf16>
    %c0_3 = arith.constant 0 : index
    %c0_4 = arith.constant 0 : index
    %5 = vector.load %arg3[%c0_3, %c0_4] : memref<128x128xbf16, #tpu.memory_space<vmem>>, vector<128x128xbf16>
    tpu.vector_store %arg3[%c0_3, %c0_4], %4 {strides = array<i32>} : memref<128x128xbf16, #tpu.memory_space<vmem>>, vector<128x128xbf16>,
    return
  }
  func.func @transform_0(%arg0: i32) -> (i32, i32) {
    %c0_i32 = arith.constant 0 : i32
    %c0_i32_0 = arith.constant 0 : i32
    return %arg0, %c0_i32 : i32, i32
  }
  func.func @transform_1(%arg0: i32) -> (i32, i32) {
    %c0_i32 = arith.constant 0 : i32
    %c0_i32_0 = arith.constant 0 : i32
    %c0_i32_1 = arith.constant 0 : i32
    return %c0_i32, %c0_i32_0 : i32, i32
  }
  func.func @transform_2(%arg0: i32) -> (i32, i32) {
    %c0_i32 = arith.constant 0 : i32
    %c0_i32_0 = arith.constant 0 : i32
    return %arg0, %c0_i32 : i32, i32
  }
}

</mosaic_0001>

<llo_original>
// kernel: tpu_custom_call.1
$region0: #{tpu_custom_call.1}
  #allocation0 [shape = 'u32[]', space=smem, size = 0x4, offset = 0x4, fixed_abs, tag = 'smem constant byte address 0x4 - core index']
  #allocation1 [shape = 'u32[144,128]{1,0:T(1,128)}', space=vmem, size = 0x12000, scoped, tag = 'internal scratch']
  %s0 = inlined_call_operand.vmem [shape: f32[128,16], index: 0, kind: input, shape index: {}]
  %s1 = inlined_call_operand.vmem [shape: bf16[16,128], index: 1, kind: input, shape index: {}]
  %s2 = inlined_call_operand.hbm [shape: bf16[128,128], index: 2, kind: output, shape index: {}]
  %s3 = sld [smem:[#allocation0]]
  $region18: #{tpu_custom_call.1} parent=0
    _
  %s5 = ssub.s32 1, %s3
  %s6 = scalar_select 0, %s5, %s3
  $region1: #{tpu_custom_call.1} parent=0
    #allocation2 [shape = 'u8[32768]{0}', space=vmem, size = 0x8000, scoped, tag = 'output window, operand 0, single buffered']
    #allocation3 [shape = 's32[1]{0}', space=sflag, size = 0x4, scoped, tag = 'scoped memory for tpu_custom_call.1']
    %7 = vsyncpa [#allocation3], 0
    // Predicated region
    $region2: #{tpu_custom_call.1} parent=1 // pred_check
      _
    $region3: #{tpu_custom_call.1} parent=1 // pred_check_branch
      %9 = sbr.rel (0) target = $region5
    $region4: #{tpu_custom_call.1} parent=1 // pred_region
      _
    $region5: #{tpu_custom_call.1} parent=1 // pred_fallthru
      _
    // Predicated region
    $region6: #{tpu_custom_call.1} parent=1 // pred_check
      _
    $region7: #{tpu_custom_call.1} parent=1 // pred_check_branch
      %11 = sbr.rel (0) target = $region9
    $region8: #{tpu_custom_call.1} parent=1 // pred_region
      _
    $region9: #{tpu_custom_call.1} parent=1 // pred_fallthru
      _
    %v13 = vld [vmem:[%s0] sm:$0xff]
    %v14 = vld [vmem:[%s0 + $0x8] sm:$0xff]
    %v15 = vld [vmem:[%s0 + $0x10] sm:$0xff]
    %v16 = vld [vmem:[%s0 + $0x18] sm:$0xff]
    %v17 = vld [vmem:[%s0 + $0x20] sm:$0xff]
    %v18 = vld [vmem:[%s0 + $0x28] sm:$0xff]
    %v19 = vld [vmem:[%s0 + $0x30] sm:$0xff]
    %v20 = vld [vmem:[%s0 + $0x38] sm:$0xff]
    %v21 = vld [vmem:[%s0 + $0x40] sm:$0xff]
    %v22 = vld [vmem:[%s0 + $0x48] sm:$0xff]
    %v23 = vld [vmem:[%s0 + $0x50] sm:$0xff]
    %v24 = vld [vmem:[%s0 + $0x58] sm:$0xff]
    %v25 = vld [vmem:[%s0 + $0x60] sm:$0xff]
    %v26 = vld [vmem:[%s0 + $0x68] sm:$0xff]
    %v27 = vld [vmem:[%s0 + $0x70] sm:$0xff]
    %v28 = vld [vmem:[%s0 + $0x78] sm:$0xff]
    %v29 = vpack.c.bf16 %v14, %v13
    %v30 = vpack.c.bf16 %v16, %v15
    %v31 = vpack.c.bf16 %v18, %v17
    %v32 = vpack.c.bf16 %v20, %v19
    %v33 = vpack.c.bf16 %v22, %v21
    %v34 = vpack.c.bf16 %v24, %v23
    %v35 = vpack.c.bf16 %v26, %v25
    %v36 = vpack.c.bf16 %v28, %v27
    %v37 = vld [vmem:[%s1] sm:$0xf]
    %v38 = vld [vmem:[%s1 + $0x4] sm:$0xf]
    %v41 = vunpack.c.l.b16 %v37
    %v42 = vunpack.c.l.b16 %v38
    %v43 = vpack.c.b16 %v42, %v41
    %vm45 = vcmask 130048
    %v47 = vsel %vm45, %v29, 0
    %v50 = vsel %vm45, %v30, 0
    %v53 = vsel %vm45, %v31, 0
    %v56 = vsel %vm45, %v32, 0
    %v59 = vsel %vm45, %v33, 0
    %v62 = vsel %vm45, %v34, 0
    %v65 = vsel %vm45, %v35, 0
    %v68 = vsel %vm45, %v36, 0
    %70 = vmatprep.subr.bf16.mxu0 0
    %71 = vmatpush1.bf16.msra.mxu0 0
    %72 = vmatprep.subr.bf16.mxu0 0
    %73 = vmatpush1.bf16.msra.mxu0 0
    %74 = vmatprep.subr.bf16.mxu0 0
    %75 = vmatpush1.bf16.msra.mxu0 0
    %76 = vmatprep.subr.bf16.mxu0 0
    %77 = vmatpush1.bf16.msra.mxu0 0
    %78 = vmatprep.subr.bf16.mxu0 0
    %79 = vmatpush1.bf16.msra.mxu0 0
    %80 = vmatprep.subr.bf16.mxu0 0
    %81 = vmatpush1.bf16.msra.mxu0 0
    %82 = vmatprep.subr.bf16.mxu0 0
    %83 = vmatpush1.bf16.msra.mxu0 0
    %84 = vmatprep.subr.bf16.mxu0 0
    %85 = vmatpush1.bf16.msra.mxu0 %v43
    %86 = vmatprep.subr.bf16.mxu0 0
    %87 = vmatpush2.bf16.msra.mxu0 0
    %88 = vmatprep.subr.bf16.mxu0 0
    %89 = vmatpush2.bf16.msra.mxu0 0
    %90 = vmatprep.subr.bf16.mxu0 0
    %91 = vmatpush2.bf16.msra.mxu0 0
    %92 = vmatprep.subr.bf16.mxu0 0
    %93 = vmatpush2.bf16.msra.mxu0 0
    %94 = vmatprep.subr.bf16.mxu0 0
    %95 = vmatpush2.bf16.msra.mxu0 0
    %96 = vmatprep.subr.bf16.mxu0 0
    %97 = vmatpush2.bf16.msra.mxu0 0
    %98 = vmatprep.subr.bf16.mxu0 0
    %99 = vmatpush2.bf16.msra.mxu0 0
    %100 = vmatprep.subr.bf16.mxu0 0
    %101 = vmatpush2.bf16.msra.mxu0 0
    %102 = vmatprep.mubr.bf16.mxu0 0
    %103 = vmatmul.mubr.bf16.gmra.mxu0 %v47
    %v104 = vpop.f32.mrf.mxu0
    %v105 = vadd.f32 0.0, %v104
    %v106 = vpop.f32.mrf.mxu0
    %v107 = vpop.f32.mrf.mxu0
    %v108 = vadd.f32 0.0, %v107
    %v109 = vpop.f32.mrf.mxu0
    %110 = vmatprep.mubr.bf16.mxu0 0
    %111 = vmatmul.mubr.bf16.gmra.mxu0 %v50
    %v112 = vpop.f32.mrf.mxu0
    %v113 = vadd.f32 0.0, %v112
    %v114 = vpop.f32.mrf.mxu0
    %v115 = vpop.f32.mrf.mxu0
    %v116 = vadd.f32 0.0, %v115
    %v117 = vpop.f32.mrf.mxu0
    %118 = vmatprep.mubr.bf16.mxu0 0
    %119 = vmatmul.mubr.bf16.gmra.mxu0 %v53
    %v120 = vpop.f32.mrf.mxu0
    %v121 = vadd.f32 0.0, %v120
    %v122 = vpop.f32.mrf.mxu0
    %v123 = vpop.f32.mrf.mxu0
    %v124 = vadd.f32 0.0, %v123
    %v125 = vpop.f32.mrf.mxu0
    %126 = vmatprep.mubr.bf16.mxu0 0
    %127 = vmatmul.mubr.bf16.gmra.mxu0 %v56
    %v128 = vpop.f32.mrf.mxu0
    %v129 = vadd.f32 0.0, %v128
    %v130 = vpop.f32.mrf.mxu0
    %v131 = vpop.f32.mrf.mxu0
    %v132 = vadd.f32 0.0, %v131
    %v133 = vpop.f32.mrf.mxu0
    %134 = vmatprep.mubr.bf16.mxu0 0
    %135 = vmatmul.mubr.bf16.gmra.mxu0 %v59
    %v136 = vpop.f32.mrf.mxu0
    %v137 = vadd.f32 0.0, %v136
    %v138 = vpop.f32.mrf.mxu0
    %v139 = vpop.f32.mrf.mxu0
    %v140 = vadd.f32 0.0, %v139
    %v141 = vpop.f32.mrf.mxu0
    %142 = vmatprep.mubr.bf16.mxu0 0
    %143 = vmatmul.mubr.bf16.gmra.mxu0 %v62
    %v144 = vpop.f32.mrf.mxu0
    %v145 = vadd.f32 0.0, %v144
    %v146 = vpop.f32.mrf.mxu0
    %v147 = vpop.f32.mrf.mxu0
    %v148 = vadd.f32 0.0, %v147
    %v149 = vpop.f32.mrf.mxu0
    %150 = vmatprep.mubr.bf16.mxu0 0
    %151 = vmatmul.mubr.bf16.gmra.mxu0 %v65
    %v152 = vpop.f32.mrf.mxu0
    %v153 = vadd.f32 0.0, %v152
    %v154 = vpop.f32.mrf.mxu0
    %v155 = vpop.f32.mrf.mxu0
    %v156 = vadd.f32 0.0, %v155
    %v157 = vpop.f32.mrf.mxu0
    %158 = vmatprep.mubr.bf16.mxu0 0
    %159 = vmatmul.mubr.bf16.gmra.mxu0 %v68
    %v160 = vpop.f32.mrf.mxu0
    %v161 = vadd.f32 0.0, %v160
    %v162 = vpop.f32.mrf.mxu0
    %v163 = vpop.f32.mrf.mxu0
    %v164 = vadd.f32 0.0, %v163
    %v165 = vpop.f32.mrf.mxu0
    %166 = vdwg.mxu0
    %v167 = vpack.c.bf16 %v108, %v105
    %v168 = vpack.c.bf16 %v116, %v113
    %v169 = vpack.c.bf16 %v124, %v121
    %v170 = vpack.c.bf16 %v132, %v129
    %v171 = vpack.c.bf16 %v140, %v137
    %v172 = vpack.c.bf16 %v148, %v145
    %v173 = vpack.c.bf16 %v156, %v153
    %v174 = vpack.c.bf16 %v164, %v161
    %v183 = vunpack.c.l.b16 %v167
    %v184 = vunpack.c.h.b16 %v167
    %v185 = vunpack.c.l.b16 %v168
    %v186 = vunpack.c.h.b16 %v168
    %v187 = vunpack.c.l.b16 %v169
    %v188 = vunpack.c.h.b16 %v169
    %v189 = vunpack.c.l.b16 %v170
    %v190 = vunpack.c.h.b16 %v170
    %v191 = vunpack.c.l.b16 %v171
    %v192 = vunpack.c.h.b16 %v171
    %v193 = vunpack.c.l.b16 %v172
    %v194 = vunpack.c.h.b16 %v172
    %v195 = vunpack.c.l.b16 %v173
    %v196 = vunpack.c.h.b16 %v173
    %v197 = vunpack.c.l.b16 %v174
    %v198 = vunpack.c.h.b16 %v174
    %v199 = vpack.c.b16 %v183, %v183
    %v200 = vpack.c.b16 %v184, %v184
    %v201 = vpack.c.b16 %v185, %v185
    %v202 = vpack.c.b16 %v186, %v186
    %v203 = vpack.c.b16 %v187, %v187
    %v204 = vpack.c.b16 %v188, %v188
    %v205 = vpack.c.b16 %v189, %v189
    %v206 = vpack.c.b16 %v190, %v190
    %v207 = vpack.c.b16 %v191, %v191
    %v208 = vpack.c.b16 %v192, %v192
    %v209 = vpack.c.b16 %v193, %v193
    %v210 = vpack.c.b16 %v194, %v194
    %v211 = vpack.c.b16 %v195, %v195
    %v212 = vpack.c.b16 %v196, %v196
    %v213 = vpack.c.b16 %v197, %v197
    %v214 = vpack.c.b16 %v198, %v198
    %231 = vst [vmem:[#allocation2] sm:$0xf] %v199
    %232 = vst [vmem:[#allocation2 + $0x4] sm:$0xf] %v200
    %233 = vst [vmem:[#allocation2 + $0x8] sm:$0xf] %v201
    %234 = vst [vmem:[#allocation2 + $0xc] sm:$0xf] %v202
    %235 = vst [vmem:[#allocation2 + $0x10] sm:$0xf] %v203
    %236 = vst [vmem:[#allocation2 + $0x14] sm:$0xf] %v204
    %237 = vst [vmem:[#allocation2 + $0x18] sm:$0xf] %v205
    %238 = vst [vmem:[#allocation2 + $0x1c] sm:$0xf] %v206
    %239 = vst [vmem:[#allocation2 + $0x20] sm:$0xf] %v207
    %240 = vst [vmem:[#allocation2 + $0x24] sm:$0xf] %v208
    %241 = vst [vmem:[#allocation2 + $0x28] sm:$0xf] %v209
    %242 = vst [vmem:[#allocation2 + $0x2c] sm:$0xf] %v210
    %243 = vst [vmem:[#allocation2 + $0x30] sm:$0xf] %v211
    %244 = vst [vmem:[#allocation2 + $0x34] sm:$0xf] %v212
    %245 = vst [vmem:[#allocation2 + $0x38] sm:$0xf] %v213
    %246 = vst [vmem:[#allocation2 + $0x3c] sm:$0xf] %v214
    // Predicated region
    $region10: #{tpu_custom_call.1} parent=1 // pred_check
      _
    $region11: #{tpu_custom_call.1} parent=1 // pred_check_branch
      %248 = sbr.rel (0) target = $region13
    $region12: #{tpu_custom_call.1} parent=1 // pred_region
      %s250 = ssub.s32 1024, 1024
      %251 = vsyncadd [#allocation3], %s250
      %s252 = sshll.u32 [#allocation2], 4
      %s253 = int_to_ptr.vmem [resolvable:$true] %s252
      %258 = dma.vmem_to_hbm [thread:$0]  %s253, 1024, %s2, [#allocation3], 64, 64, 4
    $region13: #{tpu_custom_call.1} parent=1 // pred_fallthru
      _
    // Predicated region
    $region14: #{tpu_custom_call.1} parent=1 // pred_check
      _
    $region15: #{tpu_custom_call.1} parent=1 // pred_check_branch
      %260 = sbr.rel (0) target = $region17
    $region16: #{tpu_custom_call.1} parent=1 // pred_region
      %261 = dma.done [#allocation3], 1024
    $region17: #{tpu_custom_call.1} parent=1 // pred_fallthru
      _
    %262 = vsyncpa [#allocation3], 1

</llo_original>
